<compile_context>
chip_gen: v6e
topology: v6e:2x2x1
jax: 0.10.0
libtpu: 0.0.40
codegen_flags: <defaults>
</compile_context>

<pallas_src>
import jax
import jax.numpy as jnp
from jax import lax
from jax.experimental import pallas as pl
from jax.experimental.pallas import tpu as pltpu

LANES = 128


def _num_grid_cores():
    """2 for megacore-style chips (2 TensorCores per device), else 1."""
    try:
        kind = jax.devices()[0].device_kind.lower()
    except Exception:
        return 1
    return 2 if ("v4" in kind or "v7" in kind) else 1


def _max_tile_rows(itemsize):
    """Per-generation max block height for the (rows, 128) input blocks."""
    try:
        kind = jax.devices()[0].device_kind.lower()
    except Exception:
        kind = ""
    if "v5e" in kind or "v5 lite" in kind or "v5litepod" in kind:
        rows = 4096   # v5e: 16 MiB default scoped VMEM -> keep 2 MiB blocks
    else:
        rows = 8192   # v6e (128 MiB) / v7x (64 MiB phys, 32 MiB scoped): 4 MiB blocks
    if itemsize <= 2:  # bf16/fp8 inputs: same byte budget -> twice the rows
        rows *= 2
    return rows


def _make_kernel(rows, tile_rows, nbpc, sublanes):
    """rows / tile_rows / nbpc / sublanes are static Python ints closed over."""

    def kernel(pred_ref, targ_ref, cnt_ref, sum_ref, sq_ref):
        c = pl.program_id(0)   # core-split axis ("parallel")
        i = pl.program_id(1)   # row-block reduction axis ("arbitrary")

        @pl.when(i == 0)
        def _init():
            cnt_ref[...] = jnp.zeros_like(cnt_ref)
            sum_ref[...] = jnp.zeros_like(sum_ref)
            sq_ref[...] = jnp.zeros_like(sq_ref)

        p = pred_ref[...].astype(jnp.float32)
        t = targ_ref[...].astype(jnp.float32)
        # One min + one compare instead of two compares + and (NaN-safe: NaN>0 is False).
        data_valid = jnp.minimum(p, t) > 0.0

        if sublanes == 8:
            # Reduce only down to one (8,128) vreg (pure cross-vreg VPU adds;
            # the reshape keeps (8,128) tiles intact so it is layout-free).
            def reduce_block(x):
                return jnp.sum(x.reshape(tile_rows // 8, 8, LANES), axis=0)
        else:
            # Tiny non-multiple-of-8 blocks only (small inputs): full reduce.
            def reduce_block(x):
                return jnp.sum(x, axis=0, keepdims=True)

        def accumulate(valid):
            # Two EUP logs (otherwise-idle slot) instead of a VALU divide,
            # and a single select; invalid lanes contribute exactly 0.
            g = jnp.where(valid, jnp.log(p) - jnp.log(t), 0.0)
            cnt_ref[...] += reduce_block(valid.astype(jnp.float32))[None]
            sum_ref[...] += reduce_block(g)[None]
            sq_ref[...] += reduce_block(g * g)[None]

        # Intended (unclamped) global row offset of this block.
        start_row = (c * nbpc + i) * tile_rows
        is_full = start_row + tile_rows <= rows

        @pl.when(is_full)
        def _full_block():
            accumulate(data_valid)

        @pl.when(jnp.logical_not(is_full))
        def _tail_block():
            # Partial / ghost block: mask rows beyond the real row count
            # (Pallas block padding content is unspecified).
            row_ids = lax.broadcasted_iota(jnp.int32, (tile_rows, LANES), 0)
            accumulate(data_valid & ((row_ids + start_row) < rows))

    return kernel


def _masked_moments(pred2d, targ2d, rows):
    """Returns (count, sum(g), sum(g^2)) over valid elements of (rows, 128) slabs."""
    itemsize = pred2d.dtype.itemsize
    max_rows = _max_tile_rows(itemsize)
    tile_rows = max_rows if rows >= max_rows else rows
    nb = pl.cdiv(rows, tile_rows)          # total row blocks
    num_split = _num_grid_cores()
    if nb < num_split:
        num_split = 1
    nbpc = pl.cdiv(nb, num_split)          # blocks per core
    sublanes = 8 if tile_rows % 8 == 0 else 1

    in_spec = pl.BlockSpec(
        (tile_rows, LANES),
        # Clamp ghost block indices (odd nb on the 2-way split); the kernel's
        # row mask zeroes their contribution.
        lambda c, i: (jnp.minimum(c * nbpc + i, nb - 1), 0),
    )
    acc_spec = pl.BlockSpec((1, sublanes, LANES), lambda c, i: (c, 0, 0))
    acc_shape = jax.ShapeDtypeStruct((num_split, sublanes, LANES), jnp.float32)

    n_elem = int(pred2d.size)
    tile_bytes = tile_rows * LANES * itemsize
    # 2 inputs x double-buffer + accumulators + headroom; capped at v7x's
    # 32 MiB default scoped limit (64 MiB physical), floored at 16 MiB.
    vmem_limit = min(max(4 * tile_bytes + (12 << 20), 16 << 20), 32 << 20)

    cost = pl.CostEstimate(
        flops=8 * n_elem,
        transcendentals=2 * n_elem,  # two logs per element
        bytes_accessed=2 * n_elem * itemsize + 3 * num_split * sublanes * LANES * 4,
    )

    cnt, s, sq = pl.pallas_call(
        _make_kernel(rows, tile_rows, nbpc, sublanes),
        out_shape=(acc_shape, acc_shape, acc_shape),
        grid_spec=pltpu.PrefetchScalarGridSpec(
            num_scalar_prefetch=0,
            grid=(num_split, nbpc),
            in_specs=[in_spec, in_spec],
            out_specs=[acc_spec, acc_spec, acc_spec],
        ),
        compiler_params=pltpu.CompilerParams(
            dimension_semantics=("parallel", "arbitrary"),
            vmem_limit_bytes=vmem_limit,
        ),
        cost_estimate=cost,
    )(pred2d, targ2d)
    return jnp.sum(cnt), jnp.sum(s), jnp.sum(sq)


def silog_loss(output, target):
    """SILogLoss forward. output/target: same-shape float arrays (e.g. NCHW)."""
    assert output.shape == target.shape
    n_elem = int(output.size)
    if n_elem == 0:
        return jnp.float32(0.0)

    flat_o = jnp.reshape(output, (-1,))    # free reshape, no dtype cast / pad
    flat_t = jnp.reshape(target, (-1,))
    n_aligned = (n_elem // LANES) * LANES

    n = jnp.float32(0.0)
    s = jnp.float32(0.0)
    sq = jnp.float32(0.0)

    if n_aligned > 0:
        if n_aligned == n_elem:
            o2d = jnp.reshape(flat_o, (-1, LANES))
            t2d = jnp.reshape(flat_t, (-1, LANES))
        else:
            o2d = jnp.reshape(lax.slice(flat_o, (0,), (n_aligned,)), (-1, LANES))
            t2d = jnp.reshape(lax.slice(flat_t, (0,), (n_aligned,)), (-1, LANES))
        kn, ks, ksq = _masked_moments(o2d, t2d, o2d.shape[0])
        n, s, sq = n + kn, s + ks, sq + ksq

    if n_aligned < n_elem:
        # < 128-element tail folded in plain JAX (negligible work, no pad copy).
        to = lax.slice(flat_o, (n_aligned,), (n_elem,)).astype(jnp.float32)
        tt = lax.slice(flat_t, (n_aligned,), (n_elem,)).astype(jnp.float32)
        tmask = jnp.minimum(to, tt) > 0.0
        tg = jnp.where(tmask,
                       jnp.log(jnp.where(tmask, to, 1.0))
                       - jnp.log(jnp.where(tmask, tt, 1.0)),
                       0.0)
        n = n + jnp.sum(tmask.astype(jnp.float32))
        s = s + jnp.sum(tg)
        sq = sq + jnp.sum(tg * tg)

    safe_n = jnp.maximum(n, 1.0)
    mean = s / safe_n
    denom = jnp.maximum(n - 1.0, 1.0)
    # Unbiased variance (torch.var default); NaN when n <= 1 (matches torch).
    var = jnp.where(n > 1.0,
                    jnp.maximum((sq - s * s / safe_n) / denom, 0.0),
                    jnp.nan)
    dg = var + 0.15 * mean * mean
    loss = jnp.sqrt(dg)
    # Return 0 if no valid elements or dg is NaN (PyTorch semantics).
    return jnp.where((n == 0.0) | jnp.isnan(dg), jnp.float32(0.0), loss)


def _reference_silog(output, target):
    o = jnp.reshape(output, (-1,)).astype(jnp.float32)
    t = jnp.reshape(target, (-1,)).astype(jnp.float32)
    mask = (o > 0) & (t > 0)
    n = jnp.sum(mask)
    g = jnp.where(mask,
                  jnp.log(jnp.where(mask, o, 1.0)) - jnp.log(jnp.where(mask, t, 1.0)),
                  0.0)
    mean = jnp.sum(g) / jnp.maximum(n, 1)
    var = jnp.sum(jnp.where(mask, (g - mean) ** 2, 0.0)) / jnp.maximum(n - 1, 1)
    var = jnp.where(n > 1, var, jnp.nan)
    dg = var + 0.15 * mean * mean
    return jnp.where((n == 0) | jnp.isnan(dg), 0.0, jnp.sqrt(dg))


if __name__ == "__main__":
    key = jax.random.PRNGKey(0)
    k1, k2, k3, k4 = jax.random.split(key, 4)

    # Primary case: NCHW, lane-aligned element count. Mixed-sign inputs so the
    # >0 mask is non-trivial.
    B, C, H, W = 2, 4, 16, 16
    output = jax.random.normal(k1, (B, C, H, W), dtype=jnp.float32) + 0.5
    target = jax.random.normal(k2, (B, C, H, W), dtype=jnp.float32) + 0.5

    loss = silog_loss(output, target)
    jax.block_until_ready(loss)
    ref = _reference_silog(output, target)
    assert jnp.allclose(loss, ref, atol=1e-5, rtol=1e-5), (loss, ref)

    # Lane-unaligned element count: exercises the no-pad prefix + JAX tail fold.
    out_u = jax.random.normal(k3, (2, 4, 145), dtype=jnp.float32) + 0.5
    tgt_u = jax.random.normal(k4, (2, 4, 145), dtype=jnp.float32) + 0.5
    loss_u = silog_loss(out_u, tgt_u)
    jax.block_until_ready(loss_u)
    ref_u = _reference_silog(out_u, tgt_u)
    assert jnp.allclose(loss_u, ref_u, atol=1e-5, rtol=1e-5), (loss_u, ref_u)

    print("KERNEL_OK")
</pallas_src>

<mosaic_0001>
module attributes {stable_mosaic.version = 11 : i64} {
  func.func @kernel(%arg0: i32, %arg1: i32, %arg2: memref<16x128xf32, #tpu.memory_space<vmem>>, %arg3: memref<16x128xf32, #tpu.memory_space<vmem>>, %arg4: memref<1x8x128xf32, #tpu.memory_space<vmem>>, %arg5: memref<1x8x128xf32, #tpu.memory_space<vmem>>, %arg6: memref<1x8x128xf32, #tpu.memory_space<vmem>>) attributes {dimension_semantics = [#tpu.dimension_semantics<parallel>, #tpu.dimension_semantics<arbitrary>], iteration_bounds = array<i64: 1, 1>, scalar_prefetch = 0 : i64, scratch_operands = 0 : i64, tpu.core_type = #tpu.core_type<tc>, window_params = [{transform_indices = @transform_0, window_bounds = array<i64: 16, 128>}, {transform_indices = @transform_1, window_bounds = array<i64: 16, 128>}, {transform_indices = @transform_2, window_bounds = array<i64: 1, 8, 128>}, {transform_indices = @transform_3, window_bounds = array<i64: 1, 8, 128>}, {transform_indices = @transform_4, window_bounds = array<i64: 1, 8, 128>}]} {
    %c0_i32 = arith.constant 0 : i32
    %0 = arith.cmpi eq, %arg1, %c0_i32 : i32
    %1 = arith.extui %0 : i1 to i32
    %c0_i32_0 = arith.constant 0 : i32
    %2 = arith.cmpi ne, %1, %c0_i32_0 : i32
    scf.if %2 {
      %cst_8 = arith.constant 0.000000e+00 : f32
      %18 = vector.broadcast %cst_8 : f32 to vector<1x8x128xf32>
      %c0_9 = arith.constant 0 : index
      %c0_10 = arith.constant 0 : index
      %c0_11 = arith.constant 0 : index
      %19 = vector.load %arg4[%c0_9, %c0_10, %c0_11] : memref<1x8x128xf32, #tpu.memory_space<vmem>>, vector<1x8x128xf32>
      tpu.vector_store %arg4[%c0_9, %c0_10, %c0_11], %18 {strides = array<i32>} : memref<1x8x128xf32, #tpu.memory_space<vmem>>, vector<1x8x128xf32>,
      %cst_12 = arith.constant 0.000000e+00 : f32
      %20 = vector.broadcast %cst_12 : f32 to vector<1x8x128xf32>
      %c0_13 = arith.constant 0 : index
      %c0_14 = arith.constant 0 : index
      %c0_15 = arith.constant 0 : index
      %21 = vector.load %arg5[%c0_13, %c0_14, %c0_15] : memref<1x8x128xf32, #tpu.memory_space<vmem>>, vector<1x8x128xf32>
      tpu.vector_store %arg5[%c0_13, %c0_14, %c0_15], %20 {strides = array<i32>} : memref<1x8x128xf32, #tpu.memory_space<vmem>>, vector<1x8x128xf32>,
      %cst_16 = arith.constant 0.000000e+00 : f32
      %22 = vector.broadcast %cst_16 : f32 to vector<1x8x128xf32>
      %c0_17 = arith.constant 0 : index
      %c0_18 = arith.constant 0 : index
      %c0_19 = arith.constant 0 : index
      %23 = vector.load %arg6[%c0_17, %c0_18, %c0_19] : memref<1x8x128xf32, #tpu.memory_space<vmem>>, vector<1x8x128xf32>
      tpu.vector_store %arg6[%c0_17, %c0_18, %c0_19], %22 {strides = array<i32>} : memref<1x8x128xf32, #tpu.memory_space<vmem>>, vector<1x8x128xf32>,
    } else {
    }
    %c0 = arith.constant 0 : index
    %c0_1 = arith.constant 0 : index
    %3 = vector.load %arg2[%c0, %c0_1] : memref<16x128xf32, #tpu.memory_space<vmem>>, vector<16x128xf32>
    %c0_2 = arith.constant 0 : index
    %c0_3 = arith.constant 0 : index
    %4 = vector.load %arg3[%c0_2, %c0_3] : memref<16x128xf32, #tpu.memory_space<vmem>>, vector<16x128xf32>
    %5 = arith.minimumf %3, %4 : vector<16x128xf32>
    %cst = arith.constant 0.000000e+00 : f32
    %6 = vector.broadcast %cst : f32 to vector<16x128xf32>
    %7 = arith.cmpf ogt, %5, %6 : vector<16x128xf32>
    %c1_i32 = arith.constant 1 : i32
    %8 = arith.muli %arg0, %c1_i32 : i32
    %9 = arith.addi %8, %arg1 : i32
    %c16_i32 = arith.constant 16 : i32
    %10 = arith.muli %9, %c16_i32 : i32
    %c16_i32_4 = arith.constant 16 : i32
    %11 = arith.addi %10, %c16_i32_4 : i32
    %c16_i32_5 = arith.constant 16 : i32
    %12 = arith.cmpi sle, %11, %c16_i32_5 : i32
    %13 = arith.extui %12 : i1 to i32
    %c0_i32_6 = arith.constant 0 : i32
    %14 = arith.cmpi ne, %13, %c0_i32_6 : i32
    scf.if %14 {
      %18 = math.log %3 : vector<16x128xf32>
      %19 = math.log %4 : vector<16x128xf32>
      %20 = arith.subf %18, %19 : vector<16x128xf32>
      %cst_8 = arith.constant 0.000000e+00 : f32
      %21 = vector.broadcast %cst_8 : f32 to vector<16x128xf32>
      %22 = arith.select %7, %20, %21 : vector<16x128xi1>, vector<16x128xf32>
      %c0_9 = arith.constant 0 : index
      %c0_10 = arith.constant 0 : index
      %c0_11 = arith.constant 0 : index
      %23 = vector.load %arg4[%c0_9, %c0_10, %c0_11] : memref<1x8x128xf32, #tpu.memory_space<vmem>>, vector<1x8x128xf32>
      %24 = arith.extui %7 : vector<16x128xi1> to vector<16x128xi32>
      %25 = arith.sitofp %24 : vector<16x128xi32> to vector<16x128xf32>
      %26 = vector.shape_cast %25 : vector<16x128xf32> to vector<2x8x128xf32>
      %cst_12 = arith.constant dense<0.000000e+00> : vector<8x128xf32>
      %27 = vector.multi_reduction <add>, %26, %cst_12 [0] : vector<2x8x128xf32> to vector<8x128xf32>
      %28 = vector.shape_cast %27 : vector<8x128xf32> to vector<1x8x128xf32>
      %29 = arith.addf %23, %28 : vector<1x8x128xf32>
      %c0_13 = arith.constant 0 : index
      %c0_14 = arith.constant 0 : index
      %c0_15 = arith.constant 0 : index
      %30 = vector.load %arg4[%c0_13, %c0_14, %c0_15] : memref<1x8x128xf32, #tpu.memory_space<vmem>>, vector<1x8x128xf32>
      tpu.vector_store %arg4[%c0_13, %c0_14, %c0_15], %29 {strides = array<i32>} : memref<1x8x128xf32, #tpu.memory_space<vmem>>, vector<1x8x128xf32>,
      %c0_16 = arith.constant 0 : index
      %c0_17 = arith.constant 0 : index
      %c0_18 = arith.constant 0 : index
      %31 = vector.load %arg5[%c0_16, %c0_17, %c0_18] : memref<1x8x128xf32, #tpu.memory_space<vmem>>, vector<1x8x128xf32>
      %32 = vector.shape_cast %22 : vector<16x128xf32> to vector<2x8x128xf32>
      %cst_19 = arith.constant dense<0.000000e+00> : vector<8x128xf32>
      %33 = vector.multi_reduction <add>, %32, %cst_19 [0] : vector<2x8x128xf32> to vector<8x128xf32>
      %34 = vector.shape_cast %33 : vector<8x128xf32> to vector<1x8x128xf32>
      %35 = arith.addf %31, %34 : vector<1x8x128xf32>
      %c0_20 = arith.constant 0 : index
      %c0_21 = arith.constant 0 : index
      %c0_22 = arith.constant 0 : index
      %36 = vector.load %arg5[%c0_20, %c0_21, %c0_22] : memref<1x8x128xf32, #tpu.memory_space<vmem>>, vector<1x8x128xf32>
      tpu.vector_store %arg5[%c0_20, %c0_21, %c0_22], %35 {strides = array<i32>} : memref<1x8x128xf32, #tpu.memory_space<vmem>>, vector<1x8x128xf32>,
      %c0_23 = arith.constant 0 : index
      %c0_24 = arith.constant 0 : index
      %c0_25 = arith.constant 0 : index
      %37 = vector.load %arg6[%c0_23, %c0_24, %c0_25] : memref<1x8x128xf32, #tpu.memory_space<vmem>>, vector<1x8x128xf32>
      %38 = arith.mulf %22, %22 : vector<16x128xf32>
      %39 = vector.shape_cast %38 : vector<16x128xf32> to vector<2x8x128xf32>
      %cst_26 = arith.constant dense<0.000000e+00> : vector<8x128xf32>
      %40 = vector.multi_reduction <add>, %39, %cst_26 [0] : vector<2x8x128xf32> to vector<8x128xf32>
      %41 = vector.shape_cast %40 : vector<8x128xf32> to vector<1x8x128xf32>
      %42 = arith.addf %37, %41 : vector<1x8x128xf32>
      %c0_27 = arith.constant 0 : index
      %c0_28 = arith.constant 0 : index
      %c0_29 = arith.constant 0 : index
      %43 = vector.load %arg6[%c0_27, %c0_28, %c0_29] : memref<1x8x128xf32, #tpu.memory_space<vmem>>, vector<1x8x128xf32>
      tpu.vector_store %arg6[%c0_27, %c0_28, %c0_29], %42 {strides = array<i32>} : memref<1x8x128xf32, #tpu.memory_space<vmem>>, vector<1x8x128xf32>,
    } else {
    }
    %true = arith.constant true
    %15 = arith.xori %12, %true : i1
    %16 = arith.extui %15 : i1 to i32
    %c0_i32_7 = arith.constant 0 : i32
    %17 = arith.cmpi ne, %16, %c0_i32_7 : i32
    scf.if %17 {
      %18 = tpu.iota {dimensions = array<i32: 0>} : vector<16x128xi32>
      %19 = vector.broadcast %10 : i32 to vector<16x128xi32>
      %20 = arith.addi %18, %19 : vector<16x128xi32>
      %c16_i32_8 = arith.constant 16 : i32
      %21 = vector.broadcast %c16_i32_8 : i32 to vector<16x128xi32>
      %22 = arith.cmpi slt, %20, %21 : vector<16x128xi32>
      %23 = arith.andi %7, %22 : vector<16x128xi1>
      %24 = math.log %3 : vector<16x128xf32>
      %25 = math.log %4 : vector<16x128xf32>
      %26 = arith.subf %24, %25 : vector<16x128xf32>
      %cst_9 = arith.constant 0.000000e+00 : f32
      %27 = vector.broadcast %cst_9 : f32 to vector<16x128xf32>
      %28 = arith.select %23, %26, %27 : vector<16x128xi1>, vector<16x128xf32>
      %c0_10 = arith.constant 0 : index
      %c0_11 = arith.constant 0 : index
      %c0_12 = arith.constant 0 : index
      %29 = vector.load %arg4[%c0_10, %c0_11, %c0_12] : memref<1x8x128xf32, #tpu.memory_space<vmem>>, vector<1x8x128xf32>
      %30 = arith.extui %23 : vector<16x128xi1> to vector<16x128xi32>
      %31 = arith.sitofp %30 : vector<16x128xi32> to vector<16x128xf32>
      %32 = vector.shape_cast %31 : vector<16x128xf32> to vector<2x8x128xf32>
      %cst_13 = arith.constant dense<0.000000e+00> : vector<8x128xf32>
      %33 = vector.multi_reduction <add>, %32, %cst_13 [0] : vector<2x8x128xf32> to vector<8x128xf32>
      %34 = vector.shape_cast %33 : vector<8x128xf32> to vector<1x8x128xf32>
      %35 = arith.addf %29, %34 : vector<1x8x128xf32>
      %c0_14 = arith.constant 0 : index
      %c0_15 = arith.constant 0 : index
      %c0_16 = arith.constant 0 : index
      %36 = vector.load %arg4[%c0_14, %c0_15, %c0_16] : memref<1x8x128xf32, #tpu.memory_space<vmem>>, vector<1x8x128xf32>
      tpu.vector_store %arg4[%c0_14, %c0_15, %c0_16], %35 {strides = array<i32>} : memref<1x8x128xf32, #tpu.memory_space<vmem>>, vector<1x8x128xf32>,
      %c0_17 = arith.constant 0 : index
      %c0_18 = arith.constant 0 : index
      %c0_19 = arith.constant 0 : index
      %37 = vector.load %arg5[%c0_17, %c0_18, %c0_19] : memref<1x8x128xf32, #tpu.memory_space<vmem>>, vector<1x8x128xf32>
      %38 = vector.shape_cast %28 : vector<16x128xf32> to vector<2x8x128xf32>
      %cst_20 = arith.constant dense<0.000000e+00> : vector<8x128xf32>
      %39 = vector.multi_reduction <add>, %38, %cst_20 [0] : vector<2x8x128xf32> to vector<8x128xf32>
      %40 = vector.shape_cast %39 : vector<8x128xf32> to vector<1x8x128xf32>
      %41 = arith.addf %37, %40 : vector<1x8x128xf32>
      %c0_21 = arith.constant 0 : index
      %c0_22 = arith.constant 0 : index
      %c0_23 = arith.constant 0 : index
      %42 = vector.load %arg5[%c0_21, %c0_22, %c0_23] : memref<1x8x128xf32, #tpu.memory_space<vmem>>, vector<1x8x128xf32>
      tpu.vector_store %arg5[%c0_21, %c0_22, %c0_23], %41 {strides = array<i32>} : memref<1x8x128xf32, #tpu.memory_space<vmem>>, vector<1x8x128xf32>,
      %c0_24 = arith.constant 0 : index
      %c0_25 = arith.constant 0 : index
      %c0_26 = arith.constant 0 : index
      %43 = vector.load %arg6[%c0_24, %c0_25, %c0_26] : memref<1x8x128xf32, #tpu.memory_space<vmem>>, vector<1x8x128xf32>
      %44 = arith.mulf %28, %28 : vector<16x128xf32>
      %45 = vector.shape_cast %44 : vector<16x128xf32> to vector<2x8x128xf32>
      %cst_27 = arith.constant dense<0.000000e+00> : vector<8x128xf32>
      %46 = vector.multi_reduction <add>, %45, %cst_27 [0] : vector<2x8x128xf32> to vector<8x128xf32>
      %47 = vector.shape_cast %46 : vector<8x128xf32> to vector<1x8x128xf32>
      %48 = arith.addf %43, %47 : vector<1x8x128xf32>
      %c0_28 = arith.constant 0 : index
      %c0_29 = arith.constant 0 : index
      %c0_30 = arith.constant 0 : index
      %49 = vector.load %arg6[%c0_28, %c0_29, %c0_30] : memref<1x8x128xf32, #tpu.memory_space<vmem>>, vector<1x8x128xf32>
      tpu.vector_store %arg6[%c0_28, %c0_29, %c0_30], %48 {strides = array<i32>} : memref<1x8x128xf32, #tpu.memory_space<vmem>>, vector<1x8x128xf32>,
    } else {
    }
    return
  }
  func.func @transform_0(%arg0: i32, %arg1: i32) -> (i32, i32) {
    %c1_i32 = arith.constant 1 : i32
    %0 = arith.muli %arg0, %c1_i32 : i32
    %1 = arith.addi %0, %arg1 : i32
    %c0_i32 = arith.constant 0 : i32
    %2 = arith.minsi %1, %c0_i32 : i32
    %c0_i32_0 = arith.constant 0 : i32
    %c0_i32_1 = arith.constant 0 : i32
    return %2, %c0_i32_0 : i32, i32
  }
  func.func @transform_1(%arg0: i32, %arg1: i32) -> (i32, i32) {
    %c1_i32 = arith.constant 1 : i32
    %0 = arith.muli %arg0, %c1_i32 : i32
    %1 = arith.addi %0, %arg1 : i32
    %c0_i32 = arith.constant 0 : i32
    %2 = arith.minsi %1, %c0_i32 : i32
    %c0_i32_0 = arith.constant 0 : i32
    %c0_i32_1 = arith.constant 0 : i32
    return %2, %c0_i32_0 : i32, i32
  }
  func.func @transform_2(%arg0: i32, %arg1: i32) -> (i32, i32, i32) {
    %c0_i32 = arith.constant 0 : i32
    %c0_i32_0 = arith.constant 0 : i32
    %c0_i32_1 = arith.constant 0 : i32
    return %arg0, %c0_i32, %c0_i32_0 : i32, i32, i32
  }
  func.func @transform_3(%arg0: i32, %arg1: i32) -> (i32, i32, i32) {
    %c0_i32 = arith.constant 0 : i32
    %c0_i32_0 = arith.constant 0 : i32
    %c0_i32_1 = arith.constant 0 : i32
    return %arg0, %c0_i32, %c0_i32_0 : i32, i32, i32
  }
  func.func @transform_4(%arg0: i32, %arg1: i32) -> (i32, i32, i32) {
    %c0_i32 = arith.constant 0 : i32
    %c0_i32_0 = arith.constant 0 : i32
    %c0_i32_1 = arith.constant 0 : i32
    return %arg0, %c0_i32, %c0_i32_0 : i32, i32, i32
  }
}

</mosaic_0001>

<llo_original>
// kernel: tpu_custom_call.1
$region0: #{tpu_custom_call.1}
  #allocation0 [shape = 'u32[]', space=smem, size = 0x4, offset = 0x4, fixed_abs, tag = 'smem constant byte address 0x4 - core index']
  #allocation1 [shape = 'u32[144,128]{1,0:T(1,128)}', space=vmem, size = 0x12000, scoped, tag = 'internal scratch']
  %s0 = inlined_call_operand.hbm [shape: f32[16,128], index: 0, kind: input, shape index: {}]
  %s1 = inlined_call_operand.hbm [shape: f32[16,128], index: 1, kind: input, shape index: {}]
  %s2 = inlined_call_operand.hbm [shape: f32[1,8,128], index: 2, kind: output, shape index: {0}]
  %s3 = inlined_call_operand.hbm [shape: f32[1,8,128], index: 3, kind: output, shape index: {1}]
  %s4 = inlined_call_operand.hbm [shape: f32[1,8,128], index: 4, kind: output, shape index: {2}]
  %5 = xla_tuple %s2, %s3, %s4
  %s6 = sld [smem:[#allocation0]]
  $region54: #{tpu_custom_call.1} parent=0
    _
  %s8 = ssub.s32 1, %s6
  %s9 = scalar_select 0, %s8, %s6
  $region1: #{tpu_custom_call.1} parent=0
    #allocation2 [shape = 'u8[8192]{0}', space=vmem, size = 0x2000, scoped, tag = 'input window, operand 0, single buffered']
    #allocation3 [shape = 's32[1]{0}', space=sflag, size = 0x4, scoped, tag = 'scoped memory for tpu_custom_call.1']
    #allocation4 [shape = 's32[1]{0}', space=sflag, size = 0x4, scoped, tag = 'scoped memory for tpu_custom_call.1']
    #allocation5 [shape = 'u8[8192]{0}', space=vmem, size = 0x2000, scoped, tag = 'input window, operand 1, single buffered']
    #allocation6 [shape = 's32[1]{0}', space=sflag, size = 0x4, scoped, tag = 'scoped memory for tpu_custom_call.1']
    #allocation7 [shape = 'u8[4096]{0}', space=vmem, size = 0x1000, scoped, tag = 'output window, operand 0, single buffered']
    #allocation8 [shape = 'u8[4096]{0}', space=vmem, size = 0x1000, scoped, tag = 'output window, operand 1, single buffered']
    #allocation9 [shape = 's32[1]{0}', space=sflag, size = 0x4, scoped, tag = 'scoped memory for tpu_custom_call.1']
    #allocation10 [shape = 'u8[4096]{0}', space=vmem, size = 0x1000, scoped, tag = 'output window, operand 2, single buffered']
    %10 = vsyncpa [#allocation3], 0
    %11 = vsyncpa [#allocation6], 0
    %12 = vsyncpa [#allocation4], 0
    %13 = vsyncpa [#allocation9], 0
    // Predicated region
    $region2: #{tpu_custom_call.1} parent=1 // pred_check
      _
    $region3: #{tpu_custom_call.1} parent=1 // pred_check_branch
      %15 = sbr.rel (0) target = $region5
    $region4: #{tpu_custom_call.1} parent=1 // pred_region
      %s16 = sadd.s32 0, 0
      %p17 = scmp.lt.s32.totalorder %s16, 0
      %s18 = scalar_select %p17, %s16, 0
      %s19 = smul.u32 2, %s18
      %s21 = ssub.s32 256, 256
      %22 = vsyncadd [#allocation3], %s21
      %s23 = smul.addr %s19, 128
      %s24 = scalar_lea.hbm %s0, %s23
      %s25 = sshll.u32 [#allocation2], 4
      %s26 = int_to_ptr.vmem [resolvable:$true] %s25
      %31 = dma.hbm_to_vmem [thread:$0]  %s24, 256, %s26, [#allocation3], 128, 128, 8
    $region5: #{tpu_custom_call.1} parent=1 // pred_fallthru
      _
    // Predicated region
    $region6: #{tpu_custom_call.1} parent=1 // pred_check
      _
    $region7: #{tpu_custom_call.1} parent=1 // pred_check_branch
      %33 = sbr.rel (0) target = $region9
    $region8: #{tpu_custom_call.1} parent=1 // pred_region
      %s34 = sadd.s32 0, 0
      %p35 = scmp.lt.s32.totalorder %s34, 0
      %s36 = scalar_select %p35, %s34, 0
      %s37 = smul.u32 2, %s36
      %s39 = ssub.s32 256, 256
      %40 = vsyncadd [#allocation6], %s39
      %s41 = smul.addr %s37, 128
      %s42 = scalar_lea.hbm %s1, %s41
      %s43 = sshll.u32 [#allocation5], 4
      %s44 = int_to_ptr.vmem [resolvable:$true] %s43
      %49 = dma.hbm_to_vmem [thread:$0]  %s42, 256, %s44, [#allocation6], 128, 128, 8
    $region9: #{tpu_custom_call.1} parent=1 // pred_fallthru
      _
    // Predicated region
    $region10: #{tpu_custom_call.1} parent=1 // pred_check
      _
    $region11: #{tpu_custom_call.1} parent=1 // pred_check_branch
      %51 = sbr.rel (0) target = $region13
    $region12: #{tpu_custom_call.1} parent=1 // pred_region
      %52 = dma.done [#allocation3], 256
    $region13: #{tpu_custom_call.1} parent=1 // pred_fallthru
      _
    // Predicated region
    $region14: #{tpu_custom_call.1} parent=1 // pred_check
      _
    $region15: #{tpu_custom_call.1} parent=1 // pred_check_branch
      %54 = sbr.rel (0) target = $region17
    $region16: #{tpu_custom_call.1} parent=1 // pred_region
      %55 = dma.done [#allocation6], 256
    $region17: #{tpu_custom_call.1} parent=1 // pred_fallthru
      _
    %s56 = sadd.s32 0, 0
    %p57 = scmp.lt.s32.totalorder %s56, 0
    %s58 = scalar_select %p57, %s56, 0
    %s59 = smul.u32 2, %s58
    %s60 = sadd.s32 0, 0
    %p61 = scmp.lt.s32.totalorder %s60, 0
    %s62 = scalar_select %p61, %s60, 0
    %s63 = smul.u32 2, %s62
    %p64 = scmp.eq.s32.totalorder 0, 0
    // Predicated region
    $region18: #{tpu_custom_call.1} parent=1 // pred_check
      %p65 = pneg %p64
    $region19: #{tpu_custom_call.1} parent=1 // pred_check_branch
      %67 = sbr.rel (%p65) target = $region21
    $region20: #{tpu_custom_call.1} parent=1 // pred_region
      %68 = vst [vmem:[#allocation7] sm:$0xff] 0.0
      %69 = vst [vmem:[#allocation8] sm:$0xff] 0.0
      %70 = vst [vmem:[#allocation10] sm:$0xff] 0.0
    $region21: #{tpu_custom_call.1} parent=1 // pred_fallthru
      _
    %v71 = vld [vmem:[#allocation2] sm:$0xff]
    %v72 = vld [vmem:[#allocation2 + $0x8] sm:$0xff]
    %v73 = vld [vmem:[#allocation5] sm:$0xff]
    %v74 = vld [vmem:[#allocation5 + $0x8] sm:$0xff]
    %v75 = vmin.f32 %v71, %v73
    %v76 = vmin.f32 %v72, %v74
    %vm77 = vcmp.gt.f32.partialorder %v75, 0.0
    %vm78 = vcmp.gt.f32.partialorder %v76, 0.0
    %s79 = sadd.s32 0, 0
    %s80 = smul.u32 %s79, 16
    %s81 = sadd.s32 %s80, 16
    %p82 = scmp.le.s32.totalorder %s81, 16
    // Predicated region
    $region22: #{tpu_custom_call.1} parent=1 // pred_check
      %p83 = pneg %p82
    $region23: #{tpu_custom_call.1} parent=1 // pred_check_branch
      %85 = sbr.rel (%p83) target = $region25
    $region24: #{tpu_custom_call.1} parent=1 // pred_region
      %v86 = vlog2.pop %v71
      %v87 = vmul.f32 %v86, 0.6931472
      %v88 = vlog2.pop %v72
      %v89 = vmul.f32 %v88, 0.6931472
      %v90 = vlog2.pop %v73
      %v91 = vmul.f32 %v90, 0.6931472
      %v92 = vlog2.pop %v74
      %v93 = vmul.f32 %v92, 0.6931472
      %v94 = vsub.f32 %v87, %v91
      %v95 = vsub.f32 %v89, %v93
      %v96 = vsel %vm77, %v94, 0.0
      %v97 = vsel %vm78, %v95, 0.0
      %v98 = vld [vmem:[#allocation7] sm:$0xff]
      %v99 = vsel %vm77, 1, 0
      %v100 = vsel %vm78, 1, 0
      %v101 = vcvt.s32.f32 %v99
      %v102 = vcvt.s32.f32 %v100
      %v103 = vadd.f32 %v101, %v102
      %v104 = vadd.f32 %v98, %v103
      %105 = vst [vmem:[#allocation7] sm:$0xff] %v104
      %v106 = vld [vmem:[#allocation8] sm:$0xff]
      %v107 = vadd.f32 %v96, %v97
      %v108 = vadd.f32 %v106, %v107
      %109 = vst [vmem:[#allocation8] sm:$0xff] %v108
      %v110 = vld [vmem:[#allocation10] sm:$0xff]
      %v111 = vmul.f32 %v96, %v96
      %v112 = vmul.f32 %v97, %v97
      %v113 = vadd.f32 %v111, %v112
      %v114 = vadd.f32 %v110, %v113
      %115 = vst [vmem:[#allocation10] sm:$0xff] %v114
    $region25: #{tpu_custom_call.1} parent=1 // pred_fallthru
      _
    %p116 = scmp.gt.s32.totalorder %s81, 16
    // Predicated region
    $region26: #{tpu_custom_call.1} parent=1 // pred_check
      %p117 = pneg %p116
    $region27: #{tpu_custom_call.1} parent=1 // pred_check_branch
      %119 = sbr.rel (%p117) target = $region29
    $region28: #{tpu_custom_call.1} parent=1 // pred_region
      %v120 = vlaneseq
      %v121 = vshrl.u32 %v120, 7
      %v122 = vadd.s32 %v121, 8
      %v123 = vstv %s80
      %v124 = vadd.s32 %v121, %v123
      %v125 = vadd.s32 %v122, %v123
      %vm126 = vcmp.lt.s32.totalorder %v124, 16
      %vm127 = vcmp.lt.s32.totalorder %v125, 16
      %vm128 = vmand %vm77, %vm126
      %vm129 = vmand %vm78, %vm127
      %v130 = vlog2.pop %v71
      %v131 = vmul.f32 %v130, 0.6931472
      %v132 = vlog2.pop %v72
      %v133 = vmul.f32 %v132, 0.6931472
      %v134 = vlog2.pop %v73
      %v135 = vmul.f32 %v134, 0.6931472
      %v136 = vlog2.pop %v74
      %v137 = vmul.f32 %v136, 0.6931472
      %v138 = vsub.f32 %v131, %v135
      %v139 = vsub.f32 %v133, %v137
      %v140 = vsel %vm128, %v138, 0.0
      %v141 = vsel %vm129, %v139, 0.0
      %v142 = vld [vmem:[#allocation7] sm:$0xff]
      %v143 = vsel %vm128, 1, 0
      %v144 = vsel %vm129, 1, 0
      %v145 = vcvt.s32.f32 %v143
      %v146 = vcvt.s32.f32 %v144
      %v147 = vadd.f32 %v145, %v146
      %v148 = vadd.f32 %v142, %v147
      %149 = vst [vmem:[#allocation7] sm:$0xff] %v148
      %v150 = vld [vmem:[#allocation8] sm:$0xff]
      %v151 = vadd.f32 %v140, %v141
      %v152 = vadd.f32 %v150, %v151
      %153 = vst [vmem:[#allocation8] sm:$0xff] %v152
      %v154 = vld [vmem:[#allocation10] sm:$0xff]
      %v155 = vmul.f32 %v140, %v140
      %v156 = vmul.f32 %v141, %v141
      %v157 = vadd.f32 %v155, %v156
      %v158 = vadd.f32 %v154, %v157
      %159 = vst [vmem:[#allocation10] sm:$0xff] %v158
    $region29: #{tpu_custom_call.1} parent=1 // pred_fallthru
      _
    // Predicated region
    $region30: #{tpu_custom_call.1} parent=1 // pred_check
      _
    $region31: #{tpu_custom_call.1} parent=1 // pred_check_branch
      %161 = sbr.rel (0) target = $region33
    $region32: #{tpu_custom_call.1} parent=1 // pred_region
      %s163 = ssub.s32 128, 128
      %164 = vsyncadd [#allocation4], %s163
      %s166 = sshll.u32 [#allocation7], 4
      %s167 = int_to_ptr.vmem [resolvable:$true] %s166
      %169 = dma.vmem_to_hbm [thread:$0]  %s167, 128, %s2, [#allocation4]
    $region33: #{tpu_custom_call.1} parent=1 // pred_fallthru
      _
    // Predicated region
    $region34: #{tpu_custom_call.1} parent=1 // pred_check
      _
    $region35: #{tpu_custom_call.1} parent=1 // pred_check_branch
      %171 = sbr.rel (0) target = $region37
    $region36: #{tpu_custom_call.1} parent=1 // pred_region
      %s173 = ssub.s32 128, 128
      %174 = vsyncadd [#allocation9], %s173
      %s176 = sshll.u32 [#allocation8], 4
      %s177 = int_to_ptr.vmem [resolvable:$true] %s176
      %179 = dma.vmem_to_hbm [thread:$0]  %s177, 128, %s3, [#allocation9]
    $region37: #{tpu_custom_call.1} parent=1 // pred_fallthru
      _
    // Predicated region
    $region38: #{tpu_custom_call.1} parent=1 // pred_check
      _
    $region39: #{tpu_custom_call.1} parent=1 // pred_check_branch
      %181 = sbr.rel (0) target = $region41
    $region40: #{tpu_custom_call.1} parent=1 // pred_region
      %s183 = ssub.s32 128, 128
      %184 = vsyncadd [#allocation9], %s183
      %s186 = sshll.u32 [#allocation10], 4
      %s187 = int_to_ptr.vmem [resolvable:$true] %s186
      %189 = dma.vmem_to_hbm [thread:$0]  %s187, 128, %s4, [#allocation9]
    $region41: #{tpu_custom_call.1} parent=1 // pred_fallthru
      _
    // Predicated region
    $region42: #{tpu_custom_call.1} parent=1 // pred_check
      _
    $region43: #{tpu_custom_call.1} parent=1 // pred_check_branch
      %191 = sbr.rel (0) target = $region45
    $region44: #{tpu_custom_call.1} parent=1 // pred_region
      %192 = dma.done [#allocation4], 128
    $region45: #{tpu_custom_call.1} parent=1 // pred_fallthru
      _
    // Predicated region
    $region46: #{tpu_custom_call.1} parent=1 // pred_check
      _
    $region47: #{tpu_custom_call.1} parent=1 // pred_check_branch
      %194 = sbr.rel (0) target = $region49
    $region48: #{tpu_custom_call.1} parent=1 // pred_region
      %195 = dma.done [#allocation9], 128
    $region49: #{tpu_custom_call.1} parent=1 // pred_fallthru
      _
    // Predicated region
    $region50: #{tpu_custom_call.1} parent=1 // pred_check
      _
    $region51: #{tpu_custom_call.1} parent=1 // pred_check_branch
      %197 = sbr.rel (0) target = $region53
    $region52: #{tpu_custom_call.1} parent=1 // pred_region
      %198 = dma.done [#allocation9], 128
    $region53: #{tpu_custom_call.1} parent=1 // pred_fallthru
      _
    %199 = vsyncpa [#allocation3], 1
    %200 = vsyncpa [#allocation6], 1
    %201 = vsyncpa [#allocation4], 1
    %202 = vsyncpa [#allocation9], 1

</llo_original>
